<compile_context>
chip_gen: v5e
topology: v5e:2x2
jax: 0.10.0
libtpu: 0.0.40
codegen_flags: <defaults>
</compile_context>

<pallas_src>
import math

import jax
import jax.numpy as jnp
from jax import lax
from jax.experimental import pallas as pl
from jax.experimental.pallas import tpu as pltpu

# Planning budgets (bytes). Footprint is planned to stay well under the
# explicit scoped limit; the limit itself stays below v7x's 64 MiB physical
# per-TC VMEM while comfortably above v5e's 16 MiB default scoped limit.
_VMEM_LIMIT_BYTES = 48 * 1024 * 1024
_VMEM_BUDGET = 24 * 1024 * 1024     # x/out tiles (double-buffered) + weight slab
_WEIGHT_BUDGET = 8 * 1024 * 1024    # max double-buffered weight slab before F_out tiling


def _attr_embed_kernel(x_ref, w_ref, o_ref):
    # x_ref : [tm, F_in]   row tile of the flattened leading axes
    # w_ref : [tn, F_in]   weight tile, torch nn.Linear layout (out, in)
    # o_ref : [tm, tn]
    acc = lax.dot_general(
        x_ref[...], w_ref[...],
        dimension_numbers=(((1,), (1,)), ((), ())),   # contract F_in of both == x @ W.T
        preferred_element_type=jnp.float32)           # MXU, f32 accumulation
    o_ref[...] = jnp.maximum(acc, 0.0).astype(o_ref.dtype)   # fused ReLU (VPU)


def _sublane(itemsize: int) -> int:
    # f32 -> 8, bf16 -> 16, int8/fp8 -> 32 (packed sublane tiles).
    return max(8, 32 // itemsize)


def _choose_tiles(m, f_in, f_out, itemsize, tm_max):
    sub = _sublane(itemsize)
    tm_max = max(sub, (tm_max // sub) * sub)   # keep caller-provided tm sublane-aligned

    # --- F_out axis: keep the full weight resident unless it blows the budget.
    if 2 * f_in * f_out * itemsize <= _WEIGHT_BUDGET or f_out <= 128:
        tn = f_out
    else:
        tn = (_WEIGHT_BUDGET // (2 * f_in * itemsize)) // 128 * 128
        tn = int(min(max(tn, 128), f_out))
    gn = pl.cdiv(f_out, tn)

    # --- Row axis: largest tile that fits the remaining VMEM budget.
    io_budget = _VMEM_BUDGET - 2 * tn * f_in * itemsize
    tm_fit = max(sub, io_budget // (2 * (f_in + tn) * itemsize))
    if m <= min(tm_fit, tm_max):
        tm, gm = m, 1        # single grid step over rows: no padding, no masking
    else:
        tm = int(max(sub, min(tm_max, (tm_fit // sub) * sub)))
        gm = pl.cdiv(m, tm)  # last row block is masked by Pallas if m % tm != 0
    return tm, gm, tn, gn


def attribute_embedding(inputs, weight, *, tm_max=1024, compute_dtype=None,
                        _force_tiles=None):
    """Pallas forward for AttributeEmbedding (default norm=False path + ReLU).

    inputs : [..., in_features]
    weight : [out_features, in_features]   (PyTorch nn.Linear layout, bias=False)
    returns: [..., out_features] in inputs.dtype

    compute_dtype: optionally cast inputs/weight (e.g. jnp.bfloat16) before the
    kernel to halve HBM bytes on this memory-bound op; accumulation stays f32.
    """
    *lead, f_in = inputs.shape
    f_out, f_in_w = weight.shape
    assert f_in_w == f_in, (weight.shape, f_in)
    out_dtype = inputs.dtype

    if compute_dtype is not None:
        inputs = inputs.astype(compute_dtype)
        weight = weight.astype(compute_dtype)

    m = math.prod(lead) if lead else 1
    x2 = inputs.reshape(m, f_in)               # reshape only; no pad, no transpose
    itemsize = jnp.dtype(x2.dtype).itemsize

    if _force_tiles is not None:               # test/debug hook
        tm, tn = _force_tiles
        gm, gn = pl.cdiv(m, tm), pl.cdiv(f_out, tn)
    else:
        tm, gm, tn, gn = _choose_tiles(m, f_in, f_out, itemsize, tm_max)

    cost = pl.CostEstimate(
        flops=2 * gm * tm * f_in * gn * tn,
        transcendentals=0,
        bytes_accessed=(gm * tm * f_in             # x: fetched once per row tile
                        + gm * gn * tn * f_in      # W: re-fetched per row tile only if split
                        + gm * tm * gn * tn) * itemsize,
    )

    # Weight block index is constant along the row axis, so the pipeline skips
    # re-fetching it; VMEM pressure from huge weights is handled by the F_out
    # split above rather than pipeline_mode tricks.
    out = pl.pallas_call(
        _attr_embed_kernel,
        out_shape=jax.ShapeDtypeStruct((m, f_out), out_dtype),
        grid_spec=pltpu.PrefetchScalarGridSpec(
            num_scalar_prefetch=0,
            grid=(gm, gn),
            in_specs=[
                pl.BlockSpec((tm, f_in), lambda i, j: (i, 0)),
                pl.BlockSpec((tn, f_in), lambda i, j: (j, 0)),   # torch layout, no transpose
            ],
            out_specs=pl.BlockSpec((tm, tn), lambda i, j: (i, j)),
        ),
        compiler_params=pltpu.CompilerParams(
            # Every (row tile, f_out tile) is independent -> megacore sharding.
            dimension_semantics=("parallel", "parallel"),
            vmem_limit_bytes=_VMEM_LIMIT_BYTES,
        ),
        cost_estimate=cost,
    )(x2, weight)

    return out.reshape(*lead, f_out)
    # TODO(synk): norm=True branch (LayerNorm before ReLU) is not implemented;
    # the module default is norm=False so it is never taken here.
    # TODO(synk): very large in_features would need a K reduction grid axis with
    # an f32 VMEM accumulator; typical attribute widths keep F_in fully resident.


def reference(inputs, weight):
    # Pure-JAX transcription of the PyTorch forward (bias=False, relu always).
    return jax.nn.relu(jnp.matmul(inputs, weight.T))


if __name__ == "__main__":
    key = jax.random.PRNGKey(0)
    kx, kw = jax.random.split(key, 2)

    # Shapes consistent with the module's TimeDistributed Linear over attribute
    # sequences: batch=4, seq=100, in_features=64, out_features=256.
    B, N, F_IN, F_OUT = 4, 100, 64, 256

    inputs = jax.random.uniform(kx, (B, N, F_IN), jnp.float32,
                                minval=-1.0, maxval=1.0)
    bound = 1.0 / math.sqrt(F_IN)
    weight = jax.random.uniform(kw, (F_OUT, F_IN), jnp.float32,
                                minval=-bound, maxval=bound)
    # Round test data to exactly-bf16-representable values so the comparison is
    # insensitive to the MXU's bf16-pass handling of f32 matmuls (accumulation
    # is f32 on both sides, so results then agree to f32 rounding).
    inputs = inputs.astype(jnp.bfloat16).astype(jnp.float32)
    weight = weight.astype(jnp.bfloat16).astype(jnp.float32)

    ref = reference(inputs, weight)

    # 1) Default path: small M collapses to a single grid step (no pad, no
    #    host-side transpose, whole problem resident in VMEM).
    out = jax.block_until_ready(attribute_embedding(inputs, weight))
    assert out.shape == (B, N, F_OUT), out.shape
    assert jnp.allclose(out, ref, rtol=1e-5, atol=1e-5), float(
        jnp.max(jnp.abs(out - ref)))

    # 2) Forced-tile path: exercises the large-M / large-F_out tiling, including
    #    the masked partial last row block (400 rows, tm=96 -> 5 row blocks,
    #    16 valid rows in the last one) and a split F_out axis (tn=128 -> 2).
    out_t = jax.block_until_ready(
        attribute_embedding(inputs, weight, _force_tiles=(96, 128)))
    assert jnp.allclose(out_t, ref, rtol=1e-5, atol=1e-5), float(
        jnp.max(jnp.abs(out_t - ref)))

    print("KERNEL_OK")
</pallas_src>

<mosaic_0001>
module attributes {stable_mosaic.version = 11 : i64} {
  func.func @_attr_embed_kernel(%arg0: i32, %arg1: i32, %arg2: memref<400x64xf32, #tpu.memory_space<vmem>>, %arg3: memref<256x64xf32, #tpu.memory_space<vmem>>, %arg4: memref<400x256xf32, #tpu.memory_space<vmem>>) attributes {dimension_semantics = [#tpu.dimension_semantics<parallel>, #tpu.dimension_semantics<parallel>], iteration_bounds = array<i64: 1, 1>, scalar_prefetch = 0 : i64, scratch_operands = 0 : i64, tpu.core_type = #tpu.core_type<tc>, window_params = [{transform_indices = @transform_0, window_bounds = array<i64: 400, 64>}, {transform_indices = @transform_1, window_bounds = array<i64: 256, 64>}, {transform_indices = @transform_2, window_bounds = array<i64: 400, 256>}]} {
    %c0 = arith.constant 0 : index
    %c0_0 = arith.constant 0 : index
    %0 = vector.load %arg2[%c0, %c0_0] : memref<400x64xf32, #tpu.memory_space<vmem>>, vector<400x64xf32>
    %c0_1 = arith.constant 0 : index
    %c0_2 = arith.constant 0 : index
    %1 = vector.load %arg3[%c0_1, %c0_2] : memref<256x64xf32, #tpu.memory_space<vmem>>, vector<256x64xf32>
    %cst = arith.constant dense<0.000000e+00> : vector<400x256xf32>
    %2 = tpu.matmul %0, %1, %cst {dimension_numbers = #tpu.dot_dimension_numbers<[1], [1], [0], [0], [0, 0, 1, 0], [], []>} : vector<400x64xf32>, vector<256x64xf32>, vector<400x256xf32> -> vector<400x256xf32>
    %cst_3 = arith.constant 0.000000e+00 : f32
    %3 = vector.broadcast %cst_3 : f32 to vector<400x256xf32>
    %4 = arith.maximumf %2, %3 : vector<400x256xf32>
    %c0_4 = arith.constant 0 : index
    %c0_5 = arith.constant 0 : index
    %5 = vector.load %arg4[%c0_4, %c0_5] : memref<400x256xf32, #tpu.memory_space<vmem>>, vector<400x256xf32>
    tpu.vector_store %arg4[%c0_4, %c0_5], %4 {strides = array<i32>} : memref<400x256xf32, #tpu.memory_space<vmem>>, vector<400x256xf32>,
    return
  }
  func.func @transform_0(%arg0: i32, %arg1: i32) -> (i32, i32) {
    %c0_i32 = arith.constant 0 : i32
    %c0_i32_0 = arith.constant 0 : i32
    return %arg0, %c0_i32 : i32, i32
  }
  func.func @transform_1(%arg0: i32, %arg1: i32) -> (i32, i32) {
    %c0_i32 = arith.constant 0 : i32
    %c0_i32_0 = arith.constant 0 : i32
    return %arg1, %c0_i32 : i32, i32
  }
  func.func @transform_2(%arg0: i32, %arg1: i32) -> (i32, i32) {
    %c0_i32 = arith.constant 0 : i32
    return %arg0, %arg1 : i32, i32
  }
}

</mosaic_0001>

<llo_original>
// kernel: tpu_custom_call.1
$region0: #{tpu_custom_call.1}
  #allocation0 [shape = 'u32[]', space=smem, size = 0x4, offset = 0x4, fixed_abs, tag = 'smem constant byte address 0x4 - core index']
  #allocation1 [shape = 'u32[72,128]{1,0:T(1,128)}', space=vmem, size = 0x9000, scoped, tag = 'internal scratch']
  %s0 = inlined_call_operand.vmem [shape: f32[400,64], index: 0, kind: input, shape index: {}]
  %s1 = inlined_call_operand.vmem [shape: f32[256,64], index: 1, kind: input, shape index: {}]
  %s2 = inlined_call_operand.hbm [shape: f32[400,256], index: 2, kind: output, shape index: {}]
  %s3 = sld [smem:[#allocation0]]
  $region18: #{tpu_custom_call.1} parent=0
    _
  %s5 = ssub.s32 1, %s3
  %s6 = scalar_select 0, %s5, %s3
  $region1: #{tpu_custom_call.1} parent=0
    #allocation2 [shape = 'u8[409600]{0}', space=vmem, size = 0x64000, scoped, tag = 'output window, operand 0, single buffered']
    #allocation3 [shape = 's32[1]{0}', space=sflag, size = 0x4, scoped, tag = 'scoped memory for tpu_custom_call.1']
    %7 = vsyncpa [#allocation3], 0
    // Predicated region
    $region2: #{tpu_custom_call.1} parent=1 // pred_check
      _
    $region3: #{tpu_custom_call.1} parent=1 // pred_check_branch
      %9 = sbr.rel (0) target = $region5
    $region4: #{tpu_custom_call.1} parent=1 // pred_region
      _
    $region5: #{tpu_custom_call.1} parent=1 // pred_fallthru
      _
    // Predicated region
    $region6: #{tpu_custom_call.1} parent=1 // pred_check
      _
    $region7: #{tpu_custom_call.1} parent=1 // pred_check_branch
      %11 = sbr.rel (0) target = $region9
    $region8: #{tpu_custom_call.1} parent=1 // pred_region
      _
    $region9: #{tpu_custom_call.1} parent=1 // pred_fallthru
      _
    %v12 = vld [vmem:[%s0] sm:$0xff]
    %v13 = vld [vmem:[%s0 + $0x8] sm:$0xff]
    %v14 = vld [vmem:[%s0 + $0x10] sm:$0xff]
    %v15 = vld [vmem:[%s0 + $0x18] sm:$0xff]
    %v16 = vld [vmem:[%s0 + $0x20] sm:$0xff]
    %v17 = vld [vmem:[%s0 + $0x28] sm:$0xff]
    %v18 = vld [vmem:[%s0 + $0x30] sm:$0xff]
    %v19 = vld [vmem:[%s0 + $0x38] sm:$0xff]
    %v20 = vld [vmem:[%s0 + $0x40] sm:$0xff]
    %v21 = vld [vmem:[%s0 + $0x48] sm:$0xff]
    %v22 = vld [vmem:[%s0 + $0x50] sm:$0xff]
    %v23 = vld [vmem:[%s0 + $0x58] sm:$0xff]
    %v24 = vld [vmem:[%s0 + $0x60] sm:$0xff]
    %v25 = vld [vmem:[%s0 + $0x68] sm:$0xff]
    %v26 = vld [vmem:[%s0 + $0x70] sm:$0xff]
    %v27 = vld [vmem:[%s0 + $0x78] sm:$0xff]
    %v28 = vld [vmem:[%s0 + $0x80] sm:$0xff]
    %v29 = vld [vmem:[%s0 + $0x88] sm:$0xff]
    %v30 = vld [vmem:[%s0 + $0x90] sm:$0xff]
    %v31 = vld [vmem:[%s0 + $0x98] sm:$0xff]
    %v32 = vld [vmem:[%s0 + $0xa0] sm:$0xff]
    %v33 = vld [vmem:[%s0 + $0xa8] sm:$0xff]
    %v34 = vld [vmem:[%s0 + $0xb0] sm:$0xff]
    %v35 = vld [vmem:[%s0 + $0xb8] sm:$0xff]
    %v36 = vld [vmem:[%s0 + $0xc0] sm:$0xff]
    %v37 = vld [vmem:[%s0 + $0xc8] sm:$0xff]
    %v38 = vld [vmem:[%s0 + $0xd0] sm:$0xff]
    %v39 = vld [vmem:[%s0 + $0xd8] sm:$0xff]
    %v40 = vld [vmem:[%s0 + $0xe0] sm:$0xff]
    %v41 = vld [vmem:[%s0 + $0xe8] sm:$0xff]
    %v42 = vld [vmem:[%s0 + $0xf0] sm:$0xff]
    %v43 = vld [vmem:[%s0 + $0xf8] sm:$0xff]
    %v44 = vld [vmem:[%s0 + $0x100] sm:$0xff]
    %v45 = vld [vmem:[%s0 + $0x108] sm:$0xff]
    %v46 = vld [vmem:[%s0 + $0x110] sm:$0xff]
    %v47 = vld [vmem:[%s0 + $0x118] sm:$0xff]
    %v48 = vld [vmem:[%s0 + $0x120] sm:$0xff]
    %v49 = vld [vmem:[%s0 + $0x128] sm:$0xff]
    %v50 = vld [vmem:[%s0 + $0x130] sm:$0xff]
    %v51 = vld [vmem:[%s0 + $0x138] sm:$0xff]
    %v52 = vld [vmem:[%s0 + $0x140] sm:$0xff]
    %v53 = vld [vmem:[%s0 + $0x148] sm:$0xff]
    %v54 = vld [vmem:[%s0 + $0x150] sm:$0xff]
    %v55 = vld [vmem:[%s0 + $0x158] sm:$0xff]
    %v56 = vld [vmem:[%s0 + $0x160] sm:$0xff]
    %v57 = vld [vmem:[%s0 + $0x168] sm:$0xff]
    %v58 = vld [vmem:[%s0 + $0x170] sm:$0xff]
    %v59 = vld [vmem:[%s0 + $0x178] sm:$0xff]
    %v60 = vld [vmem:[%s0 + $0x180] sm:$0xff]
    %v61 = vld [vmem:[%s0 + $0x188] sm:$0xff]
    %v62 = vld [vmem:[%s1] sm:$0xff]
    %v63 = vld [vmem:[%s1 + $0x8] sm:$0xff]
    %v64 = vld [vmem:[%s1 + $0x10] sm:$0xff]
    %v65 = vld [vmem:[%s1 + $0x18] sm:$0xff]
    %v66 = vld [vmem:[%s1 + $0x20] sm:$0xff]
    %v67 = vld [vmem:[%s1 + $0x28] sm:$0xff]
    %v68 = vld [vmem:[%s1 + $0x30] sm:$0xff]
    %v69 = vld [vmem:[%s1 + $0x38] sm:$0xff]
    %v70 = vld [vmem:[%s1 + $0x40] sm:$0xff]
    %v71 = vld [vmem:[%s1 + $0x48] sm:$0xff]
    %v72 = vld [vmem:[%s1 + $0x50] sm:$0xff]
    %v73 = vld [vmem:[%s1 + $0x58] sm:$0xff]
    %v74 = vld [vmem:[%s1 + $0x60] sm:$0xff]
    %v75 = vld [vmem:[%s1 + $0x68] sm:$0xff]
    %v76 = vld [vmem:[%s1 + $0x70] sm:$0xff]
    %v77 = vld [vmem:[%s1 + $0x78] sm:$0xff]
    %v78 = vld [vmem:[%s1 + $0x80] sm:$0xff]
    %v79 = vld [vmem:[%s1 + $0x88] sm:$0xff]
    %v80 = vld [vmem:[%s1 + $0x90] sm:$0xff]
    %v81 = vld [vmem:[%s1 + $0x98] sm:$0xff]
    %v82 = vld [vmem:[%s1 + $0xa0] sm:$0xff]
    %v83 = vld [vmem:[%s1 + $0xa8] sm:$0xff]
    %v84 = vld [vmem:[%s1 + $0xb0] sm:$0xff]
    %v85 = vld [vmem:[%s1 + $0xb8] sm:$0xff]
    %v86 = vld [vmem:[%s1 + $0xc0] sm:$0xff]
    %v87 = vld [vmem:[%s1 + $0xc8] sm:$0xff]
    %v88 = vld [vmem:[%s1 + $0xd0] sm:$0xff]
    %v89 = vld [vmem:[%s1 + $0xd8] sm:$0xff]
    %v90 = vld [vmem:[%s1 + $0xe0] sm:$0xff]
    %v91 = vld [vmem:[%s1 + $0xe8] sm:$0xff]
    %v92 = vld [vmem:[%s1 + $0xf0] sm:$0xff]
    %v93 = vld [vmem:[%s1 + $0xf8] sm:$0xff]
    %vm94 = vcmask 523264
    %v96 = vsel %vm94, %v12, 0
    %v99 = vsel %vm94, %v13, 0
    %v102 = vsel %vm94, %v14, 0
    %v105 = vsel %vm94, %v15, 0
    %v108 = vsel %vm94, %v16, 0
    %v111 = vsel %vm94, %v17, 0
    %v114 = vsel %vm94, %v18, 0
    %v117 = vsel %vm94, %v19, 0
    %v120 = vsel %vm94, %v20, 0
    %v123 = vsel %vm94, %v21, 0
    %v126 = vsel %vm94, %v22, 0
    %v129 = vsel %vm94, %v23, 0
    %v132 = vsel %vm94, %v24, 0
    %v135 = vsel %vm94, %v25, 0
    %v138 = vsel %vm94, %v26, 0
    %v141 = vsel %vm94, %v27, 0
    %v144 = vsel %vm94, %v28, 0
    %v147 = vsel %vm94, %v29, 0
    %v150 = vsel %vm94, %v30, 0
    %v153 = vsel %vm94, %v31, 0
    %v156 = vsel %vm94, %v32, 0
    %v159 = vsel %vm94, %v33, 0
    %v162 = vsel %vm94, %v34, 0
    %v165 = vsel %vm94, %v35, 0
    %v168 = vsel %vm94, %v36, 0
    %v171 = vsel %vm94, %v37, 0
    %v174 = vsel %vm94, %v38, 0
    %v177 = vsel %vm94, %v39, 0
    %v180 = vsel %vm94, %v40, 0
    %v183 = vsel %vm94, %v41, 0
    %v186 = vsel %vm94, %v42, 0
    %v189 = vsel %vm94, %v43, 0
    %v192 = vsel %vm94, %v44, 0
    %v195 = vsel %vm94, %v45, 0
    %v198 = vsel %vm94, %v46, 0
    %v201 = vsel %vm94, %v47, 0
    %v204 = vsel %vm94, %v48, 0
    %v207 = vsel %vm94, %v49, 0
    %v210 = vsel %vm94, %v50, 0
    %v213 = vsel %vm94, %v51, 0
    %v216 = vsel %vm94, %v52, 0
    %v219 = vsel %vm94, %v53, 0
    %v222 = vsel %vm94, %v54, 0
    %v225 = vsel %vm94, %v55, 0
    %v228 = vsel %vm94, %v56, 0
    %v231 = vsel %vm94, %v57, 0
    %v234 = vsel %vm94, %v58, 0
    %v237 = vsel %vm94, %v59, 0
    %v240 = vsel %vm94, %v60, 0
    %v243 = vsel %vm94, %v61, 0
    %v246 = vsel %vm94, %v62, 0
    %v249 = vsel %vm94, %v63, 0
    %v252 = vsel %vm94, %v64, 0
    %v255 = vsel %vm94, %v65, 0
    %v258 = vsel %vm94, %v66, 0
    %v261 = vsel %vm94, %v67, 0
    %v264 = vsel %vm94, %v68, 0
    %v267 = vsel %vm94, %v69, 0
    %v270 = vsel %vm94, %v70, 0
    %v273 = vsel %vm94, %v71, 0
    %v276 = vsel %vm94, %v72, 0
    %v279 = vsel %vm94, %v73, 0
    %v282 = vsel %vm94, %v74, 0
    %v285 = vsel %vm94, %v75, 0
    %v288 = vsel %vm94, %v76, 0
    %v291 = vsel %vm94, %v77, 0
    %v294 = vsel %vm94, %v78, 0
    %v297 = vsel %vm94, %v79, 0
    %v300 = vsel %vm94, %v80, 0
    %v303 = vsel %vm94, %v81, 0
    %v306 = vsel %vm94, %v82, 0
    %v309 = vsel %vm94, %v83, 0
    %v312 = vsel %vm94, %v84, 0
    %v315 = vsel %vm94, %v85, 0
    %v318 = vsel %vm94, %v86, 0
    %v321 = vsel %vm94, %v87, 0
    %v324 = vsel %vm94, %v88, 0
    %v327 = vsel %vm94, %v89, 0
    %v330 = vsel %vm94, %v90, 0
    %v333 = vsel %vm94, %v91, 0
    %v336 = vsel %vm94, %v92, 0
    %v339 = vsel %vm94, %v93, 0
    %341 = vmatpush.xpose.msra.mxu0 %v291
    %342 = vmatpush.xpose.msra.mxu0 %v288
    %343 = vmatpush.xpose.msra.mxu0 %v285
    %344 = vmatpush.xpose.msra.mxu0 %v282
    %345 = vmatpush.xpose.msra.mxu0 %v279
    %346 = vmatpush.xpose.msra.mxu0 %v276
    %347 = vmatpush.xpose.msra.mxu0 %v273
    %348 = vmatpush.xpose.msra.mxu0 %v270
    %349 = vmatpush.xpose.msra.mxu0 %v267
    %350 = vmatpush.xpose.msra.mxu0 %v264
    %351 = vmatpush.xpose.msra.mxu0 %v261
    %352 = vmatpush.xpose.msra.mxu0 %v258
    %353 = vmatpush.xpose.msra.mxu0 %v255
    %354 = vmatpush.xpose.msra.mxu0 %v252
    %355 = vmatpush.xpose.msra.mxu0 %v249
    %356 = vmatpush.xpose.msra.mxu0 %v246
    %357 = vmatmul.f32.gmra.mxu0 %v96
    %v358 = vpop.f32.mrf.mxu0
    %v359 = vadd.f32 0.0, %v358
    %360 = vmatmul.f32.gmra.mxu0 %v99
    %v361 = vpop.f32.mrf.mxu0
    %v362 = vadd.f32 0.0, %v361
    %363 = vmatmul.f32.gmra.mxu0 %v102
    %v364 = vpop.f32.mrf.mxu0
    %v365 = vadd.f32 0.0, %v364
    %366 = vmatmul.f32.gmra.mxu0 %v105
    %v367 = vpop.f32.mrf.mxu0
    %v368 = vadd.f32 0.0, %v367
    %369 = vmatmul.f32.gmra.mxu0 %v108
    %v370 = vpop.f32.mrf.mxu0
    %v371 = vadd.f32 0.0, %v370
    %372 = vmatmul.f32.gmra.mxu0 %v111
    %v373 = vpop.f32.mrf.mxu0
    %v374 = vadd.f32 0.0, %v373
    %375 = vmatmul.f32.gmra.mxu0 %v114
    %v376 = vpop.f32.mrf.mxu0
    %v377 = vadd.f32 0.0, %v376
    %378 = vmatmul.f32.gmra.mxu0 %v117
    %v379 = vpop.f32.mrf.mxu0
    %v380 = vadd.f32 0.0, %v379
    %381 = vmatmul.f32.gmra.mxu0 %v120
    %v382 = vpop.f32.mrf.mxu0
    %v383 = vadd.f32 0.0, %v382
    %384 = vmatmul.f32.gmra.mxu0 %v123
    %v385 = vpop.f32.mrf.mxu0
    %v386 = vadd.f32 0.0, %v385
    %387 = vmatmul.f32.gmra.mxu0 %v126
    %v388 = vpop.f32.mrf.mxu0
    %v389 = vadd.f32 0.0, %v388
    %390 = vmatmul.f32.gmra.mxu0 %v129
    %v391 = vpop.f32.mrf.mxu0
    %v392 = vadd.f32 0.0, %v391
    %393 = vmatmul.f32.gmra.mxu0 %v132
    %v394 = vpop.f32.mrf.mxu0
    %v395 = vadd.f32 0.0, %v394
    %396 = vmatmul.f32.gmra.mxu0 %v135
    %v397 = vpop.f32.mrf.mxu0
    %v398 = vadd.f32 0.0, %v397
    %399 = vmatmul.f32.gmra.mxu0 %v138
    %v400 = vpop.f32.mrf.mxu0
    %v401 = vadd.f32 0.0, %v400
    %402 = vmatmul.f32.gmra.mxu0 %v141
    %v403 = vpop.f32.mrf.mxu0
    %v404 = vadd.f32 0.0, %v403
    %405 = vmatmul.f32.gmra.mxu0 %v144
    %v406 = vpop.f32.mrf.mxu0
    %v407 = vadd.f32 0.0, %v406
    %408 = vmatmul.f32.gmra.mxu0 %v147
    %v409 = vpop.f32.mrf.mxu0
    %v410 = vadd.f32 0.0, %v409
    %411 = vmatmul.f32.gmra.mxu0 %v150
    %v412 = vpop.f32.mrf.mxu0
    %v413 = vadd.f32 0.0, %v412
    %414 = vmatmul.f32.gmra.mxu0 %v153
    %v415 = vpop.f32.mrf.mxu0
    %v416 = vadd.f32 0.0, %v415
    %417 = vmatmul.f32.gmra.mxu0 %v156
    %v418 = vpop.f32.mrf.mxu0
    %v419 = vadd.f32 0.0, %v418
    %420 = vmatmul.f32.gmra.mxu0 %v159
    %v421 = vpop.f32.mrf.mxu0
    %v422 = vadd.f32 0.0, %v421
    %423 = vmatmul.f32.gmra.mxu0 %v162
    %v424 = vpop.f32.mrf.mxu0
    %v425 = vadd.f32 0.0, %v424
    %426 = vmatmul.f32.gmra.mxu0 %v165
    %v427 = vpop.f32.mrf.mxu0
    %v428 = vadd.f32 0.0, %v427
    %429 = vmatmul.f32.gmra.mxu0 %v168
    %v430 = vpop.f32.mrf.mxu0
    %v431 = vadd.f32 0.0, %v430
    %432 = vmatmul.f32.gmra.mxu0 %v171
    %v433 = vpop.f32.mrf.mxu0
    %v434 = vadd.f32 0.0, %v433
    %435 = vmatmul.f32.gmra.mxu0 %v174
    %v436 = vpop.f32.mrf.mxu0
    %v437 = vadd.f32 0.0, %v436
    %438 = vmatmul.f32.gmra.mxu0 %v177
    %v439 = vpop.f32.mrf.mxu0
    %v440 = vadd.f32 0.0, %v439
    %441 = vmatmul.f32.gmra.mxu0 %v180
    %v442 = vpop.f32.mrf.mxu0
    %v443 = vadd.f32 0.0, %v442
    %444 = vmatmul.f32.gmra.mxu0 %v183
    %v445 = vpop.f32.mrf.mxu0
    %v446 = vadd.f32 0.0, %v445
    %447 = vmatmul.f32.gmra.mxu0 %v186
    %v448 = vpop.f32.mrf.mxu0
    %v449 = vadd.f32 0.0, %v448
    %450 = vmatmul.f32.gmra.mxu0 %v189
    %v451 = vpop.f32.mrf.mxu0
    %v452 = vadd.f32 0.0, %v451
    %453 = vmatmul.f32.gmra.mxu0 %v192
    %v454 = vpop.f32.mrf.mxu0
    %v455 = vadd.f32 0.0, %v454
    %456 = vmatmul.f32.gmra.mxu0 %v195
    %v457 = vpop.f32.mrf.mxu0
    %v458 = vadd.f32 0.0, %v457
    %459 = vmatmul.f32.gmra.mxu0 %v198
    %v460 = vpop.f32.mrf.mxu0
    %v461 = vadd.f32 0.0, %v460
    %462 = vmatmul.f32.gmra.mxu0 %v201
    %v463 = vpop.f32.mrf.mxu0
    %v464 = vadd.f32 0.0, %v463
    %465 = vmatmul.f32.gmra.mxu0 %v204
    %v466 = vpop.f32.mrf.mxu0
    %v467 = vadd.f32 0.0, %v466
    %468 = vmatmul.f32.gmra.mxu0 %v207
    %v469 = vpop.f32.mrf.mxu0
    %v470 = vadd.f32 0.0, %v469
    %471 = vmatmul.f32.gmra.mxu0 %v210
    %v472 = vpop.f32.mrf.mxu0
    %v473 = vadd.f32 0.0, %v472
    %474 = vmatmul.f32.gmra.mxu0 %v213
    %v475 = vpop.f32.mrf.mxu0
    %v476 = vadd.f32 0.0, %v475
    %477 = vmatmul.f32.gmra.mxu0 %v216
    %v478 = vpop.f32.mrf.mxu0
    %v479 = vadd.f32 0.0, %v478
    %480 = vmatmul.f32.gmra.mxu0 %v219
    %v481 = vpop.f32.mrf.mxu0
    %v482 = vadd.f32 0.0, %v481
    %483 = vmatmul.f32.gmra.mxu0 %v222
    %v484 = vpop.f32.mrf.mxu0
    %v485 = vadd.f32 0.0, %v484
    %486 = vmatmul.f32.gmra.mxu0 %v225
    %v487 = vpop.f32.mrf.mxu0
    %v488 = vadd.f32 0.0, %v487
    %489 = vmatmul.f32.gmra.mxu0 %v228
    %v490 = vpop.f32.mrf.mxu0
    %v491 = vadd.f32 0.0, %v490
    %492 = vmatmul.f32.gmra.mxu0 %v231
    %v493 = vpop.f32.mrf.mxu0
    %v494 = vadd.f32 0.0, %v493
    %495 = vmatmul.f32.gmra.mxu0 %v234
    %v496 = vpop.f32.mrf.mxu0
    %v497 = vadd.f32 0.0, %v496
    %498 = vmatmul.f32.gmra.mxu0 %v237
    %v499 = vpop.f32.mrf.mxu0
    %v500 = vadd.f32 0.0, %v499
    %501 = vmatmul.f32.gmra.mxu0 %v240
    %v502 = vpop.f32.mrf.mxu0
    %v503 = vadd.f32 0.0, %v502
    %504 = vmatmul.f32.gmra.mxu0 %v243
    %v505 = vpop.f32.mrf.mxu0
    %v506 = vadd.f32 0.0, %v505
    %507 = vdwg.mxu0
    %508 = vmatpush.xpose.msra.mxu0 %v339
    %509 = vmatpush.xpose.msra.mxu0 %v336
    %510 = vmatpush.xpose.msra.mxu0 %v333
    %511 = vmatpush.xpose.msra.mxu0 %v330
    %512 = vmatpush.xpose.msra.mxu0 %v327
    %513 = vmatpush.xpose.msra.mxu0 %v324
    %514 = vmatpush.xpose.msra.mxu0 %v321
    %515 = vmatpush.xpose.msra.mxu0 %v318
    %516 = vmatpush.xpose.msra.mxu0 %v315
    %517 = vmatpush.xpose.msra.mxu0 %v312
    %518 = vmatpush.xpose.msra.mxu0 %v309
    %519 = vmatpush.xpose.msra.mxu0 %v306
    %520 = vmatpush.xpose.msra.mxu0 %v303
    %521 = vmatpush.xpose.msra.mxu0 %v300
    %522 = vmatpush.xpose.msra.mxu0 %v297
    %523 = vmatpush.xpose.msra.mxu0 %v294
    %524 = vmatmul.f32.gmra.mxu0 %v96
    %v525 = vpop.f32.mrf.mxu0
    %v526 = vadd.f32 0.0, %v525
    %527 = vmatmul.f32.gmra.mxu0 %v99
    %v528 = vpop.f32.mrf.mxu0
    %v529 = vadd.f32 0.0, %v528
    %530 = vmatmul.f32.gmra.mxu0 %v102
    %v531 = vpop.f32.mrf.mxu0
    %v532 = vadd.f32 0.0, %v531
    %533 = vmatmul.f32.gmra.mxu0 %v105
    %v534 = vpop.f32.mrf.mxu0
    %v535 = vadd.f32 0.0, %v534
    %536 = vmatmul.f32.gmra.mxu0 %v108
    %v537 = vpop.f32.mrf.mxu0
    %v538 = vadd.f32 0.0, %v537
    %539 = vmatmul.f32.gmra.mxu0 %v111
    %v540 = vpop.f32.mrf.mxu0
    %v541 = vadd.f32 0.0, %v540
    %542 = vmatmul.f32.gmra.mxu0 %v114
    %v543 = vpop.f32.mrf.mxu0
    %v544 = vadd.f32 0.0, %v543
    %545 = vmatmul.f32.gmra.mxu0 %v117
    %v546 = vpop.f32.mrf.mxu0
    %v547 = vadd.f32 0.0, %v546
    %548 = vmatmul.f32.gmra.mxu0 %v120
    %v549 = vpop.f32.mrf.mxu0
    %v550 = vadd.f32 0.0, %v549
    %551 = vmatmul.f32.gmra.mxu0 %v123
    %v552 = vpop.f32.mrf.mxu0
    %v553 = vadd.f32 0.0, %v552
    %554 = vmatmul.f32.gmra.mxu0 %v126
    %v555 = vpop.f32.mrf.mxu0
    %v556 = vadd.f32 0.0, %v555
    %557 = vmatmul.f32.gmra.mxu0 %v129
    %v558 = vpop.f32.mrf.mxu0
    %v559 = vadd.f32 0.0, %v558
    %560 = vmatmul.f32.gmra.mxu0 %v132
    %v561 = vpop.f32.mrf.mxu0
    %v562 = vadd.f32 0.0, %v561
    %563 = vmatmul.f32.gmra.mxu0 %v135
    %v564 = vpop.f32.mrf.mxu0
    %v565 = vadd.f32 0.0, %v564
    %566 = vmatmul.f32.gmra.mxu0 %v138
    %v567 = vpop.f32.mrf.mxu0
    %v568 = vadd.f32 0.0, %v567
    %569 = vmatmul.f32.gmra.mxu0 %v141
    %v570 = vpop.f32.mrf.mxu0
    %v571 = vadd.f32 0.0, %v570
    %572 = vmatmul.f32.gmra.mxu0 %v144
    %v573 = vpop.f32.mrf.mxu0
    %v574 = vadd.f32 0.0, %v573
    %575 = vmatmul.f32.gmra.mxu0 %v147
    %v576 = vpop.f32.mrf.mxu0
    %v577 = vadd.f32 0.0, %v576
    %578 = vmatmul.f32.gmra.mxu0 %v150
    %v579 = vpop.f32.mrf.mxu0
    %v580 = vadd.f32 0.0, %v579
    %581 = vmatmul.f32.gmra.mxu0 %v153
    %v582 = vpop.f32.mrf.mxu0
    %v583 = vadd.f32 0.0, %v582
    %584 = vmatmul.f32.gmra.mxu0 %v156
    %v585 = vpop.f32.mrf.mxu0
    %v586 = vadd.f32 0.0, %v585
    %587 = vmatmul.f32.gmra.mxu0 %v159
    %v588 = vpop.f32.mrf.mxu0
    %v589 = vadd.f32 0.0, %v588
    %590 = vmatmul.f32.gmra.mxu0 %v162
    %v591 = vpop.f32.mrf.mxu0
    %v592 = vadd.f32 0.0, %v591
    %593 = vmatmul.f32.gmra.mxu0 %v165
    %v594 = vpop.f32.mrf.mxu0
    %v595 = vadd.f32 0.0, %v594
    %596 = vmatmul.f32.gmra.mxu0 %v168
    %v597 = vpop.f32.mrf.mxu0
    %v598 = vadd.f32 0.0, %v597
    %599 = vmatmul.f32.gmra.mxu0 %v171
    %v600 = vpop.f32.mrf.mxu0
    %v601 = vadd.f32 0.0, %v600
    %602 = vmatmul.f32.gmra.mxu0 %v174
    %v603 = vpop.f32.mrf.mxu0
    %v604 = vadd.f32 0.0, %v603
    %605 = vmatmul.f32.gmra.mxu0 %v177
    %v606 = vpop.f32.mrf.mxu0
    %v607 = vadd.f32 0.0, %v606
    %608 = vmatmul.f32.gmra.mxu0 %v180
    %v609 = vpop.f32.mrf.mxu0
    %v610 = vadd.f32 0.0, %v609
    %611 = vmatmul.f32.gmra.mxu0 %v183
    %v612 = vpop.f32.mrf.mxu0
    %v613 = vadd.f32 0.0, %v612
    %614 = vmatmul.f32.gmra.mxu0 %v186
    %v615 = vpop.f32.mrf.mxu0
    %v616 = vadd.f32 0.0, %v615
    %617 = vmatmul.f32.gmra.mxu0 %v189
    %v618 = vpop.f32.mrf.mxu0
    %v619 = vadd.f32 0.0, %v618
    %620 = vmatmul.f32.gmra.mxu0 %v192
    %v621 = vpop.f32.mrf.mxu0
    %v622 = vadd.f32 0.0, %v621
    %623 = vmatmul.f32.gmra.mxu0 %v195
    %v624 = vpop.f32.mrf.mxu0
    %v625 = vadd.f32 0.0, %v624
    %626 = vmatmul.f32.gmra.mxu0 %v198
    %v627 = vpop.f32.mrf.mxu0
    %v628 = vadd.f32 0.0, %v627
    %629 = vmatmul.f32.gmra.mxu0 %v201
    %v630 = vpop.f32.mrf.mxu0
    %v631 = vadd.f32 0.0, %v630
    %632 = vmatmul.f32.gmra.mxu0 %v204
    %v633 = vpop.f32.mrf.mxu0
    %v634 = vadd.f32 0.0, %v633
    %635 = vmatmul.f32.gmra.mxu0 %v207
    %v636 = vpop.f32.mrf.mxu0
    %v637 = vadd.f32 0.0, %v636
    %638 = vmatmul.f32.gmra.mxu0 %v210
    %v639 = vpop.f32.mrf.mxu0
    %v640 = vadd.f32 0.0, %v639
    %641 = vmatmul.f32.gmra.mxu0 %v213
    %v642 = vpop.f32.mrf.mxu0
    %v643 = vadd.f32 0.0, %v642
    %644 = vmatmul.f32.gmra.mxu0 %v216
    %v645 = vpop.f32.mrf.mxu0
    %v646 = vadd.f32 0.0, %v645
    %647 = vmatmul.f32.gmra.mxu0 %v219
    %v648 = vpop.f32.mrf.mxu0
    %v649 = vadd.f32 0.0, %v648
    %650 = vmatmul.f32.gmra.mxu0 %v222
    %v651 = vpop.f32.mrf.mxu0
    %v652 = vadd.f32 0.0, %v651
    %653 = vmatmul.f32.gmra.mxu0 %v225
    %v654 = vpop.f32.mrf.mxu0
    %v655 = vadd.f32 0.0, %v654
    %656 = vmatmul.f32.gmra.mxu0 %v228
    %v657 = vpop.f32.mrf.mxu0
    %v658 = vadd.f32 0.0, %v657
    %659 = vmatmul.f32.gmra.mxu0 %v231
    %v660 = vpop.f32.mrf.mxu0
    %v661 = vadd.f32 0.0, %v660
    %662 = vmatmul.f32.gmra.mxu0 %v234
    %v663 = vpop.f32.mrf.mxu0
    %v664 = vadd.f32 0.0, %v663
    %665 = vmatmul.f32.gmra.mxu0 %v237
    %v666 = vpop.f32.mrf.mxu0
    %v667 = vadd.f32 0.0, %v666
    %668 = vmatmul.f32.gmra.mxu0 %v240
    %v669 = vpop.f32.mrf.mxu0
    %v670 = vadd.f32 0.0, %v669
    %671 = vmatmul.f32.gmra.mxu0 %v243
    %v672 = vpop.f32.mrf.mxu0
    %v673 = vadd.f32 0.0, %v672
    %674 = vdwg.mxu0
    %v675 = vmax.f32 %v359, 0.0
    %v676 = vmax.f32 %v526, 0.0
    %v677 = vmax.f32 %v362, 0.0
    %v678 = vmax.f32 %v529, 0.0
    %v679 = vmax.f32 %v365, 0.0
    %v680 = vmax.f32 %v532, 0.0
    %v681 = vmax.f32 %v368, 0.0
    %v682 = vmax.f32 %v535, 0.0
    %v683 = vmax.f32 %v371, 0.0
    %v684 = vmax.f32 %v538, 0.0
    %v685 = vmax.f32 %v374, 0.0
    %v686 = vmax.f32 %v541, 0.0
    %v687 = vmax.f32 %v377, 0.0
    %v688 = vmax.f32 %v544, 0.0
    %v689 = vmax.f32 %v380, 0.0
    %v690 = vmax.f32 %v547, 0.0
    %v691 = vmax.f32 %v383, 0.0
    %v692 = vmax.f32 %v550, 0.0
    %v693 = vmax.f32 %v386, 0.0
    %v694 = vmax.f32 %v553, 0.0
    %v695 = vmax.f32 %v389, 0.0
    %v696 = vmax.f32 %v556, 0.0
    %v697 = vmax.f32 %v392, 0.0
    %v698 = vmax.f32 %v559, 0.0
    %v699 = vmax.f32 %v395, 0.0
    %v700 = vmax.f32 %v562, 0.0
    %v701 = vmax.f32 %v398, 0.0
    %v702 = vmax.f32 %v565, 0.0
    %v703 = vmax.f32 %v401, 0.0
    %v704 = vmax.f32 %v568, 0.0
    %v705 = vmax.f32 %v404, 0.0
    %v706 = vmax.f32 %v571, 0.0
    %v707 = vmax.f32 %v407, 0.0
    %v708 = vmax.f32 %v574, 0.0
    %v709 = vmax.f32 %v410, 0.0
    %v710 = vmax.f32 %v577, 0.0
    %v711 = vmax.f32 %v413, 0.0
    %v712 = vmax.f32 %v580, 0.0
    %v713 = vmax.f32 %v416, 0.0
    %v714 = vmax.f32 %v583, 0.0
    %v715 = vmax.f32 %v419, 0.0
    %v716 = vmax.f32 %v586, 0.0
    %v717 = vmax.f32 %v422, 0.0
    %v718 = vmax.f32 %v589, 0.0
    %v719 = vmax.f32 %v425, 0.0
    %v720 = vmax.f32 %v592, 0.0
    %v721 = vmax.f32 %v428, 0.0
    %v722 = vmax.f32 %v595, 0.0
    %v723 = vmax.f32 %v431, 0.0
    %v724 = vmax.f32 %v598, 0.0
    %v725 = vmax.f32 %v434, 0.0
    %v726 = vmax.f32 %v601, 0.0
    %v727 = vmax.f32 %v437, 0.0
    %v728 = vmax.f32 %v604, 0.0
    %v729 = vmax.f32 %v440, 0.0
    %v730 = vmax.f32 %v607, 0.0
    %v731 = vmax.f32 %v443, 0.0
    %v732 = vmax.f32 %v610, 0.0
    %v733 = vmax.f32 %v446, 0.0
    %v734 = vmax.f32 %v613, 0.0
    %v735 = vmax.f32 %v449, 0.0
    %v736 = vmax.f32 %v616, 0.0
    %v737 = vmax.f32 %v452, 0.0
    %v738 = vmax.f32 %v619, 0.0
    %v739 = vmax.f32 %v455, 0.0
    %v740 = vmax.f32 %v622, 0.0
    %v741 = vmax.f32 %v458, 0.0
    %v742 = vmax.f32 %v625, 0.0
    %v743 = vmax.f32 %v461, 0.0
    %v744 = vmax.f32 %v628, 0.0
    %v745 = vmax.f32 %v464, 0.0
    %v746 = vmax.f32 %v631, 0.0
    %v747 = vmax.f32 %v467, 0.0
    %v748 = vmax.f32 %v634, 0.0
    %v749 = vmax.f32 %v470, 0.0
    %v750 = vmax.f32 %v637, 0.0
    %v751 = vmax.f32 %v473, 0.0
    %v752 = vmax.f32 %v640, 0.0
    %v753 = vmax.f32 %v476, 0.0
    %v754 = vmax.f32 %v643, 0.0
    %v755 = vmax.f32 %v479, 0.0
    %v756 = vmax.f32 %v646, 0.0
    %v757 = vmax.f32 %v482, 0.0
    %v758 = vmax.f32 %v649, 0.0
    %v759 = vmax.f32 %v485, 0.0
    %v760 = vmax.f32 %v652, 0.0
    %v761 = vmax.f32 %v488, 0.0
    %v762 = vmax.f32 %v655, 0.0
    %v763 = vmax.f32 %v491, 0.0
    %v764 = vmax.f32 %v658, 0.0
    %v765 = vmax.f32 %v494, 0.0
    %v766 = vmax.f32 %v661, 0.0
    %v767 = vmax.f32 %v497, 0.0
    %v768 = vmax.f32 %v664, 0.0
    %v769 = vmax.f32 %v500, 0.0
    %v770 = vmax.f32 %v667, 0.0
    %v771 = vmax.f32 %v503, 0.0
    %v772 = vmax.f32 %v670, 0.0
    %v773 = vmax.f32 %v506, 0.0
    %v774 = vmax.f32 %v673, 0.0
    %775 = vst [vmem:[#allocation2] sm:$0xff] %v675
    %776 = vst [vmem:[#allocation2 + $0x8] sm:$0xff] %v676
    %777 = vst [vmem:[#allocation2 + $0x10] sm:$0xff] %v677
    %778 = vst [vmem:[#allocation2 + $0x18] sm:$0xff] %v678
    %779 = vst [vmem:[#allocation2 + $0x20] sm:$0xff] %v679
    %780 = vst [vmem:[#allocation2 + $0x28] sm:$0xff] %v680
    %781 = vst [vmem:[#allocation2 + $0x30] sm:$0xff] %v681
    %782 = vst [vmem:[#allocation2 + $0x38] sm:$0xff] %v682
    %783 = vst [vmem:[#allocation2 + $0x40] sm:$0xff] %v683
    %784 = vst [vmem:[#allocation2 + $0x48] sm:$0xff] %v684
    %785 = vst [vmem:[#allocation2 + $0x50] sm:$0xff] %v685
    %786 = vst [vmem:[#allocation2 + $0x58] sm:$0xff] %v686
    %787 = vst [vmem:[#allocation2 + $0x60] sm:$0xff] %v687
    %788 = vst [vmem:[#allocation2 + $0x68] sm:$0xff] %v688
    %789 = vst [vmem:[#allocation2 + $0x70] sm:$0xff] %v689
    %790 = vst [vmem:[#allocation2 + $0x78] sm:$0xff] %v690
    %791 = vst [vmem:[#allocation2 + $0x80] sm:$0xff] %v691
    %792 = vst [vmem:[#allocation2 + $0x88] sm:$0xff] %v692
    %793 = vst [vmem:[#allocation2 + $0x90] sm:$0xff] %v693
    %794 = vst [vmem:[#allocation2 + $0x98] sm:$0xff] %v694
    %795 = vst [vmem:[#allocation2 + $0xa0] sm:$0xff] %v695
    %796 = vst [vmem:[#allocation2 + $0xa8] sm:$0xff] %v696
    %797 = vst [vmem:[#allocation2 + $0xb0] sm:$0xff] %v697
    %798 = vst [vmem:[#allocation2 + $0xb8] sm:$0xff] %v698
    %799 = vst [vmem:[#allocation2 + $0xc0] sm:$0xff] %v699
    %800 = vst [vmem:[#allocation2 + $0xc8] sm:$0xff] %v700
    %801 = vst [vmem:[#allocation2 + $0xd0] sm:$0xff] %v701
    %802 = vst [vmem:[#allocation2 + $0xd8] sm:$0xff] %v702
    %803 = vst [vmem:[#allocation2 + $0xe0] sm:$0xff] %v703
    %804 = vst [vmem:[#allocation2 + $0xe8] sm:$0xff] %v704
    %805 = vst [vmem:[#allocation2 + $0xf0] sm:$0xff] %v705
    %806 = vst [vmem:[#allocation2 + $0xf8] sm:$0xff] %v706
    %807 = vst [vmem:[#allocation2 + $0x100] sm:$0xff] %v707
    %808 = vst [vmem:[#allocation2 + $0x108] sm:$0xff] %v708
    %809 = vst [vmem:[#allocation2 + $0x110] sm:$0xff] %v709
    %810 = vst [vmem:[#allocation2 + $0x118] sm:$0xff] %v710
    %811 = vst [vmem:[#allocation2 + $0x120] sm:$0xff] %v711
    %812 = vst [vmem:[#allocation2 + $0x128] sm:$0xff] %v712
    %813 = vst [vmem:[#allocation2 + $0x130] sm:$0xff] %v713
    %814 = vst [vmem:[#allocation2 + $0x138] sm:$0xff] %v714
    %815 = vst [vmem:[#allocation2 + $0x140] sm:$0xff] %v715
    %816 = vst [vmem:[#allocation2 + $0x148] sm:$0xff] %v716
    %817 = vst [vmem:[#allocation2 + $0x150] sm:$0xff] %v717
    %818 = vst [vmem:[#allocation2 + $0x158] sm:$0xff] %v718
    %819 = vst [vmem:[#allocation2 + $0x160] sm:$0xff] %v719
    %820 = vst [vmem:[#allocation2 + $0x168] sm:$0xff] %v720
    %821 = vst [vmem:[#allocation2 + $0x170] sm:$0xff] %v721
    %822 = vst [vmem:[#allocation2 + $0x178] sm:$0xff] %v722
    %823 = vst [vmem:[#allocation2 + $0x180] sm:$0xff] %v723
    %824 = vst [vmem:[#allocation2 + $0x188] sm:$0xff] %v724
    %825 = vst [vmem:[#allocation2 + $0x190] sm:$0xff] %v725
    %826 = vst [vmem:[#allocation2 + $0x198] sm:$0xff] %v726
    %827 = vst [vmem:[#allocation2 + $0x1a0] sm:$0xff] %v727
    %828 = vst [vmem:[#allocation2 + $0x1a8] sm:$0xff] %v728
    %829 = vst [vmem:[#allocation2 + $0x1b0] sm:$0xff] %v729
    %830 = vst [vmem:[#allocation2 + $0x1b8] sm:$0xff] %v730
    %831 = vst [vmem:[#allocation2 + $0x1c0] sm:$0xff] %v731
    %832 = vst [vmem:[#allocation2 + $0x1c8] sm:$0xff] %v732
    %833 = vst [vmem:[#allocation2 + $0x1d0] sm:$0xff] %v733
    %834 = vst [vmem:[#allocation2 + $0x1d8] sm:$0xff] %v734
    %835 = vst [vmem:[#allocation2 + $0x1e0] sm:$0xff] %v735
    %836 = vst [vmem:[#allocation2 + $0x1e8] sm:$0xff] %v736
    %837 = vst [vmem:[#allocation2 + $0x1f0] sm:$0xff] %v737
    %838 = vst [vmem:[#allocation2 + $0x1f8] sm:$0xff] %v738
    %839 = vst [vmem:[#allocation2 + $0x200] sm:$0xff] %v739
    %840 = vst [vmem:[#allocation2 + $0x208] sm:$0xff] %v740
    %841 = vst [vmem:[#allocation2 + $0x210] sm:$0xff] %v741
    %842 = vst [vmem:[#allocation2 + $0x218] sm:$0xff] %v742
    %843 = vst [vmem:[#allocation2 + $0x220] sm:$0xff] %v743
    %844 = vst [vmem:[#allocation2 + $0x228] sm:$0xff] %v744
    %845 = vst [vmem:[#allocation2 + $0x230] sm:$0xff] %v745
    %846 = vst [vmem:[#allocation2 + $0x238] sm:$0xff] %v746
    %847 = vst [vmem:[#allocation2 + $0x240] sm:$0xff] %v747
    %848 = vst [vmem:[#allocation2 + $0x248] sm:$0xff] %v748
    %849 = vst [vmem:[#allocation2 + $0x250] sm:$0xff] %v749
    %850 = vst [vmem:[#allocation2 + $0x258] sm:$0xff] %v750
    %851 = vst [vmem:[#allocation2 + $0x260] sm:$0xff] %v751
    %852 = vst [vmem:[#allocation2 + $0x268] sm:$0xff] %v752
    %853 = vst [vmem:[#allocation2 + $0x270] sm:$0xff] %v753
    %854 = vst [vmem:[#allocation2 + $0x278] sm:$0xff] %v754
    %855 = vst [vmem:[#allocation2 + $0x280] sm:$0xff] %v755
    %856 = vst [vmem:[#allocation2 + $0x288] sm:$0xff] %v756
    %857 = vst [vmem:[#allocation2 + $0x290] sm:$0xff] %v757
    %858 = vst [vmem:[#allocation2 + $0x298] sm:$0xff] %v758
    %859 = vst [vmem:[#allocation2 + $0x2a0] sm:$0xff] %v759
    %860 = vst [vmem:[#allocation2 + $0x2a8] sm:$0xff] %v760
    %861 = vst [vmem:[#allocation2 + $0x2b0] sm:$0xff] %v761
    %862 = vst [vmem:[#allocation2 + $0x2b8] sm:$0xff] %v762
    %863 = vst [vmem:[#allocation2 + $0x2c0] sm:$0xff] %v763
    %864 = vst [vmem:[#allocation2 + $0x2c8] sm:$0xff] %v764
    %865 = vst [vmem:[#allocation2 + $0x2d0] sm:$0xff] %v765
    %866 = vst [vmem:[#allocation2 + $0x2d8] sm:$0xff] %v766
    %867 = vst [vmem:[#allocation2 + $0x2e0] sm:$0xff] %v767
    %868 = vst [vmem:[#allocation2 + $0x2e8] sm:$0xff] %v768
    %869 = vst [vmem:[#allocation2 + $0x2f0] sm:$0xff] %v769
    %870 = vst [vmem:[#allocation2 + $0x2f8] sm:$0xff] %v770
    %871 = vst [vmem:[#allocation2 + $0x300] sm:$0xff] %v771
    %872 = vst [vmem:[#allocation2 + $0x308] sm:$0xff] %v772
    %873 = vst [vmem:[#allocation2 + $0x310] sm:$0xff] %v773
    %874 = vst [vmem:[#allocation2 + $0x318] sm:$0xff] %v774
    // Predicated region
    $region10: #{tpu_custom_call.1} parent=1 // pred_check
      _
    $region11: #{tpu_custom_call.1} parent=1 // pred_check_branch
      %876 = sbr.rel (0) target = $region13
    $region12: #{tpu_custom_call.1} parent=1 // pred_region
      %878 = vsyncadd [#allocation3], 0
      %s879 = sshll.u32 [#allocation2], 4
      %s880 = int_to_ptr.vmem [resolvable:$true] %s879
      %s881 = sshll.u32 %s2, 4
      %s882 = int_to_ptr.hbm [resolvable:$true] %s881
      %887 = dma.vmem_to_hbm [thread:$0]  %s880, 12800, %s882, [#allocation3], 256, 256, 16
    $region13: #{tpu_custom_call.1} parent=1 // pred_fallthru
      _
    // Predicated region
    $region14: #{tpu_custom_call.1} parent=1 // pred_check
      _
    $region15: #{tpu_custom_call.1} parent=1 // pred_check_branch
      %889 = sbr.rel (0) target = $region17
    $region16: #{tpu_custom_call.1} parent=1 // pred_region
      %891 = dma.done [#allocation3], 12800
    $region17: #{tpu_custom_call.1} parent=1 // pred_fallthru
      _
    %892 = vsyncpa [#allocation3], 1

</llo_original>
